<compile_context>
chip_gen: v7x
topology: tpu7x:2x2x1
jax: 0.10.0
libtpu: 0.0.40
codegen_flags: <defaults>
</compile_context>

<pallas_src>
import jax
import jax.numpy as jnp
from jax.experimental import pallas as pl
from jax.experimental.pallas import tpu as pltpu


def _leaky_relu(x, negative_slope=0.01):
    return jnp.where(x > 0, x, negative_slope * x)


def dqn_blinds_kernel(x_ref, w1_ref, b1_ref, w4_ref, b4_ref, wh_ref, bh_ref,
                      out_ref):
    # One row-tile of the batch per grid step; weights stay VMEM-resident.
    x = x_ref[...]

    # linear1 + leaky_relu  (hidden padded to 128 lanes; pad lanes stay zero)
    h1 = jnp.dot(x, w1_ref[...], preferred_element_type=jnp.float32) + b1_ref[...]
    h1 = _leaky_relu(h1)

    # linear4 + leaky_relu
    h2 = jnp.dot(h1, w4_ref[...], preferred_element_type=jnp.float32) + b4_ref[...]
    h2 = _leaky_relu(h2)

    # fused heads (stpt || blind), small padded output -> minimal HBM writeback
    out_ref[...] = (jnp.dot(h2, wh_ref[...], preferred_element_type=jnp.float32)
                    + bh_ref[...])


def init_params(key, input_dim, hidden_dim, n_stpt_actions, n_blind_actions):
    """Deterministic PyTorch-style (uniform +/- 1/sqrt(fan_in)) init.

    Weights stored PyTorch-style as (out, in); prepare_params() re-lays them out.
    """
    ks = jax.random.split(key, 8)

    def linear(kw, kb, fan_in, fan_out):
        bound = 1.0 / jnp.sqrt(jnp.float32(fan_in))
        w = jax.random.uniform(kw, (fan_out, fan_in), jnp.float32, -bound, bound)
        b = jax.random.uniform(kb, (fan_out,), jnp.float32, -bound, bound)
        return w, b

    w1, b1 = linear(ks[0], ks[1], input_dim, hidden_dim)
    w4, b4 = linear(ks[2], ks[3], hidden_dim, hidden_dim)
    ws, bs = linear(ks[4], ks[5], hidden_dim, n_stpt_actions)
    wb, bb = linear(ks[6], ks[7], hidden_dim, n_blind_actions)
    return dict(w1=w1, b1=b1, w4=w4, b4=b4, ws=ws, bs=bs, wb=wb, bb=bb)


def prepare_params(params):
    """One-time layout prep (hoisted out of the forward hot path).

    - transpose weights to (in, out); biases to (1, out)
    - zero-pad the hidden dim up to a multiple of 128 (lane-dense, exact numerics)
    - concatenate the two heads and zero-pad only to a multiple of 8 lanes so the
      HBM output writeback stays tiny.
    """
    hidden, d_in = params["w1"].shape
    n_stpt = params["ws"].shape[0]
    n_blind = params["wb"].shape[0]
    n_out = n_stpt + n_blind
    n_pad = ((n_out + 7) // 8) * 8
    h_pad = ((hidden + 127) // 128) * 128

    f32 = jnp.float32
    w1 = jnp.zeros((d_in, h_pad), f32).at[:, :hidden].set(params["w1"].T.astype(f32))
    b1 = jnp.zeros((1, h_pad), f32).at[:, :hidden].set(params["b1"].astype(f32))
    w4 = jnp.zeros((h_pad, h_pad), f32).at[:hidden, :hidden].set(params["w4"].T.astype(f32))
    b4 = jnp.zeros((1, h_pad), f32).at[:, :hidden].set(params["b4"].astype(f32))

    w_heads = jnp.concatenate([params["ws"].T, params["wb"].T], axis=1)   # (hidden, n_out)
    b_heads = jnp.concatenate([params["bs"], params["bb"]])               # (n_out,)
    wh = jnp.zeros((h_pad, n_pad), f32).at[:hidden, :n_out].set(w_heads.astype(f32))
    bh = jnp.zeros((1, n_pad), f32).at[:, :n_out].set(b_heads.astype(f32))

    return dict(w1=w1, b1=b1, w4=w4, b4=b4, wh=wh, bh=bh,
                n_stpt=n_stpt, n_blind=n_blind)


def deep_q_leaky_blinds_forward(x, prepared, *, max_row_tile=1024):
    """Pallas-backed forward. x: (B, input_dim). Returns (stpt, blind)."""
    x = x.astype(jnp.float32)        # mirrors x.float() in the PyTorch module
    B, d_in = x.shape
    h_pad = prepared["w1"].shape[1]
    n_pad = prepared["wh"].shape[1]
    n_stpt = prepared["n_stpt"]
    n_blind = prepared["n_blind"]

    # Row tile: whole batch (block dim == full array dim, legal even if B % 8 != 0)
    # for small B, otherwise a large multiple-of-8 tile.  Ragged last block is
    # handled by Pallas -- no wrapper-side jnp.pad copy of x.
    assert max_row_tile % 8 == 0
    tb = B if B <= max_row_tile else max_row_tile
    n_tiles = pl.cdiv(B, tb)

    const = lambda shape: pl.BlockSpec(shape, lambda i: (0, 0))  # VMEM-resident

    out_full = pl.pallas_call(
        dqn_blinds_kernel,
        out_shape=jax.ShapeDtypeStruct((B, n_pad), jnp.float32),
        grid=(n_tiles,),
        in_specs=[
            pl.BlockSpec((tb, d_in), lambda i: (i, 0)),
            const((d_in, h_pad)),
            const((1, h_pad)),
            const((h_pad, h_pad)),
            const((1, h_pad)),
            const((h_pad, n_pad)),
            const((1, n_pad)),
        ],
        out_specs=pl.BlockSpec((tb, n_pad), lambda i: (i, 0)),
        compiler_params=pltpu.CompilerParams(
            dimension_semantics=("parallel",)),
    )(x, prepared["w1"], prepared["b1"], prepared["w4"], prepared["b4"],
      prepared["wh"], prepared["bh"])

    stpt = out_full[:, :n_stpt]
    blind = out_full[:, n_stpt:n_stpt + n_blind]
    return stpt, blind


def reference_forward(x, params):
    """Pure-JAX reference mirroring the PyTorch module."""
    def leaky(v):
        return jnp.where(v > 0, v, 0.01 * v)
    x = x.astype(jnp.float32)
    h1 = leaky(x @ params["w1"].T + params["b1"])
    h2 = leaky(h1 @ params["w4"].T + params["b4"])
    stpt = h2 @ params["ws"].T + params["bs"]
    blind = h2 @ params["wb"].T + params["bb"]
    return stpt, blind


if __name__ == "__main__":
    key = jax.random.PRNGKey(0)
    k_param, k_x1, k_x2 = jax.random.split(key, 3)

    # Small shapes consistent with the module's constructor:
    #   input_dims=[16], hidden_dim=32, n_stpt_actions=6, n_blind_actions=4
    B, D_IN, HIDDEN, N_STPT, N_BLIND = 8, 16, 32, 6, 4

    params = init_params(k_param, D_IN, HIDDEN, N_STPT, N_BLIND)
    prepared = prepare_params(params)          # one-time layout prep
    x = jax.random.normal(k_x1, (B, D_IN), jnp.float32)

    stpt, blind = deep_q_leaky_blinds_forward(x, prepared)
    jax.block_until_ready((stpt, blind))

    stpt_ref, blind_ref = reference_forward(x, params)
    assert stpt.shape == (B, N_STPT) and blind.shape == (B, N_BLIND)
    assert jnp.allclose(stpt, stpt_ref, atol=1e-5, rtol=1e-5)
    assert jnp.allclose(blind, blind_ref, atol=1e-5, rtol=1e-5)

    # Extra check: batch that is not a multiple of 8 (single full-batch tile path).
    B2 = 20
    x2 = jax.random.normal(k_x2, (B2, D_IN), jnp.float32)
    stpt2, blind2 = deep_q_leaky_blinds_forward(x2, prepared)
    jax.block_until_ready((stpt2, blind2))
    stpt2_ref, blind2_ref = reference_forward(x2, params)
    assert jnp.allclose(stpt2, stpt2_ref, atol=1e-5, rtol=1e-5)
    assert jnp.allclose(blind2, blind2_ref, atol=1e-5, rtol=1e-5)

    print("KERNEL_OK")
</pallas_src>

<mosaic_0001>
module attributes {stable_mosaic.version = 11 : i64} {
  func.func @dqn_blinds_kernel(%arg0: i32, %arg1: memref<8x16xf32, #tpu.memory_space<vmem>>, %arg2: memref<16x128xf32, #tpu.memory_space<vmem>>, %arg3: memref<1x128xf32, #tpu.memory_space<vmem>>, %arg4: memref<128x128xf32, #tpu.memory_space<vmem>>, %arg5: memref<1x128xf32, #tpu.memory_space<vmem>>, %arg6: memref<128x16xf32, #tpu.memory_space<vmem>>, %arg7: memref<1x16xf32, #tpu.memory_space<vmem>>, %arg8: memref<8x16xf32, #tpu.memory_space<vmem>>) attributes {dimension_semantics = [#tpu.dimension_semantics<parallel>], iteration_bounds = array<i64: 1>, scalar_prefetch = 0 : i64, scratch_operands = 0 : i64, tpu.core_type = #tpu.core_type<tc>, window_params = [{transform_indices = @transform_0, window_bounds = array<i64: 8, 16>}, {pipeline_mode = #tpu.pipeline_mode<synchronous>, transform_indices = @transform_1, window_bounds = array<i64: 16, 128>}, {pipeline_mode = #tpu.pipeline_mode<synchronous>, transform_indices = @transform_2, window_bounds = array<i64: 1, 128>}, {pipeline_mode = #tpu.pipeline_mode<synchronous>, transform_indices = @transform_3, window_bounds = array<i64: 128, 128>}, {pipeline_mode = #tpu.pipeline_mode<synchronous>, transform_indices = @transform_4, window_bounds = array<i64: 1, 128>}, {pipeline_mode = #tpu.pipeline_mode<synchronous>, transform_indices = @transform_5, window_bounds = array<i64: 128, 16>}, {pipeline_mode = #tpu.pipeline_mode<synchronous>, transform_indices = @transform_6, window_bounds = array<i64: 1, 16>}, {transform_indices = @transform_7, window_bounds = array<i64: 8, 16>}]} {
    %c0 = arith.constant 0 : index
    %c0_0 = arith.constant 0 : index
    %0 = vector.load %arg1[%c0, %c0_0] : memref<8x16xf32, #tpu.memory_space<vmem>>, vector<8x16xf32>
    %c0_1 = arith.constant 0 : index
    %c0_2 = arith.constant 0 : index
    %1 = vector.load %arg2[%c0_1, %c0_2] : memref<16x128xf32, #tpu.memory_space<vmem>>, vector<16x128xf32>
    %cst = arith.constant dense<0.000000e+00> : vector<8x128xf32>
    %2 = tpu.matmul %0, %1, %cst {dimension_numbers = #tpu.dot_dimension_numbers<[1], [0], [0], [1], [0, 0, 1, 1], [], []>} : vector<8x16xf32>, vector<16x128xf32>, vector<8x128xf32> -> vector<8x128xf32>
    %c0_3 = arith.constant 0 : index
    %c0_4 = arith.constant 0 : index
    %3 = vector.load %arg3[%c0_3, %c0_4] : memref<1x128xf32, #tpu.memory_space<vmem>>, vector<1x128xf32>
    %4 = vector.broadcast %3 : vector<1x128xf32> to vector<8x128xf32>
    %5 = arith.addf %2, %4 : vector<8x128xf32>
    %cst_5 = arith.constant 0.000000e+00 : f32
    %6 = vector.broadcast %cst_5 : f32 to vector<8x128xf32>
    %7 = arith.cmpf ogt, %5, %6 : vector<8x128xf32>
    %cst_6 = arith.constant 0.00999999977 : f32
    %8 = vector.broadcast %cst_6 : f32 to vector<8x128xf32>
    %9 = arith.mulf %8, %5 : vector<8x128xf32>
    %10 = arith.select %7, %5, %9 : vector<8x128xi1>, vector<8x128xf32>
    %c0_7 = arith.constant 0 : index
    %c0_8 = arith.constant 0 : index
    %11 = vector.load %arg4[%c0_7, %c0_8] : memref<128x128xf32, #tpu.memory_space<vmem>>, vector<128x128xf32>
    %cst_9 = arith.constant dense<0.000000e+00> : vector<8x128xf32>
    %12 = tpu.matmul %10, %11, %cst_9 {dimension_numbers = #tpu.dot_dimension_numbers<[1], [0], [0], [1], [0, 0, 1, 1], [], []>} : vector<8x128xf32>, vector<128x128xf32>, vector<8x128xf32> -> vector<8x128xf32>
    %c0_10 = arith.constant 0 : index
    %c0_11 = arith.constant 0 : index
    %13 = vector.load %arg5[%c0_10, %c0_11] : memref<1x128xf32, #tpu.memory_space<vmem>>, vector<1x128xf32>
    %14 = vector.broadcast %13 : vector<1x128xf32> to vector<8x128xf32>
    %15 = arith.addf %12, %14 : vector<8x128xf32>
    %cst_12 = arith.constant 0.000000e+00 : f32
    %16 = vector.broadcast %cst_12 : f32 to vector<8x128xf32>
    %17 = arith.cmpf ogt, %15, %16 : vector<8x128xf32>
    %cst_13 = arith.constant 0.00999999977 : f32
    %18 = vector.broadcast %cst_13 : f32 to vector<8x128xf32>
    %19 = arith.mulf %18, %15 : vector<8x128xf32>
    %20 = arith.select %17, %15, %19 : vector<8x128xi1>, vector<8x128xf32>
    %c0_14 = arith.constant 0 : index
    %c0_15 = arith.constant 0 : index
    %21 = vector.load %arg6[%c0_14, %c0_15] : memref<128x16xf32, #tpu.memory_space<vmem>>, vector<128x16xf32>
    %cst_16 = arith.constant dense<0.000000e+00> : vector<8x16xf32>
    %22 = tpu.matmul %20, %21, %cst_16 {dimension_numbers = #tpu.dot_dimension_numbers<[1], [0], [0], [1], [0, 0, 1, 1], [], []>} : vector<8x128xf32>, vector<128x16xf32>, vector<8x16xf32> -> vector<8x16xf32>
    %c0_17 = arith.constant 0 : index
    %c0_18 = arith.constant 0 : index
    %23 = vector.load %arg7[%c0_17, %c0_18] : memref<1x16xf32, #tpu.memory_space<vmem>>, vector<1x16xf32>
    %24 = vector.broadcast %23 : vector<1x16xf32> to vector<8x16xf32>
    %25 = arith.addf %22, %24 : vector<8x16xf32>
    %c0_19 = arith.constant 0 : index
    %c0_20 = arith.constant 0 : index
    %26 = vector.load %arg8[%c0_19, %c0_20] : memref<8x16xf32, #tpu.memory_space<vmem>>, vector<8x16xf32>
    tpu.vector_store %arg8[%c0_19, %c0_20], %25 {strides = array<i32>} : memref<8x16xf32, #tpu.memory_space<vmem>>, vector<8x16xf32>,
    return
  }
  func.func @transform_0(%arg0: i32) -> (i32, i32) {
    %c0_i32 = arith.constant 0 : i32
    %c0_i32_0 = arith.constant 0 : i32
    return %arg0, %c0_i32 : i32, i32
  }
  func.func @transform_1(%arg0: i32) -> (i32, i32) {
    %c0_i32 = arith.constant 0 : i32
    %c0_i32_0 = arith.constant 0 : i32
    %c0_i32_1 = arith.constant 0 : i32
    return %c0_i32, %c0_i32_0 : i32, i32
  }
  func.func @transform_2(%arg0: i32) -> (i32, i32) {
    %c0_i32 = arith.constant 0 : i32
    %c0_i32_0 = arith.constant 0 : i32
    %c0_i32_1 = arith.constant 0 : i32
    return %c0_i32, %c0_i32_0 : i32, i32
  }
  func.func @transform_3(%arg0: i32) -> (i32, i32) {
    %c0_i32 = arith.constant 0 : i32
    %c0_i32_0 = arith.constant 0 : i32
    %c0_i32_1 = arith.constant 0 : i32
    return %c0_i32, %c0_i32_0 : i32, i32
  }
  func.func @transform_4(%arg0: i32) -> (i32, i32) {
    %c0_i32 = arith.constant 0 : i32
    %c0_i32_0 = arith.constant 0 : i32
    %c0_i32_1 = arith.constant 0 : i32
    return %c0_i32, %c0_i32_0 : i32, i32
  }
  func.func @transform_5(%arg0: i32) -> (i32, i32) {
    %c0_i32 = arith.constant 0 : i32
    %c0_i32_0 = arith.constant 0 : i32
    %c0_i32_1 = arith.constant 0 : i32
    return %c0_i32, %c0_i32_0 : i32, i32
  }
  func.func @transform_6(%arg0: i32) -> (i32, i32) {
    %c0_i32 = arith.constant 0 : i32
    %c0_i32_0 = arith.constant 0 : i32
    %c0_i32_1 = arith.constant 0 : i32
    return %c0_i32, %c0_i32_0 : i32, i32
  }
  func.func @transform_7(%arg0: i32) -> (i32, i32) {
    %c0_i32 = arith.constant 0 : i32
    %c0_i32_0 = arith.constant 0 : i32
    return %arg0, %c0_i32 : i32, i32
  }
}

</mosaic_0001>

<llo_original>
// kernel: tpu_custom_call.1
$region0: #{tpu_custom_call.1}
  #allocation0 [shape = 'u32[]', space=smem, size = 0x4, offset = 0x4, fixed_abs, tag = 'smem constant byte address 0x4 - core index']
  #allocation1 [shape = 'u32[144,128]{1,0:T(1,128)}', space=vmem, size = 0x12000, scoped, tag = 'internal scratch']
  %s0 = inlined_call_operand.hbm [shape: f32[8,16], index: 0, kind: input, shape index: {}]
  %s1 = inlined_call_operand.vmem [shape: f32[16,128], index: 1, kind: input, shape index: {}]
  %s2 = inlined_call_operand.vmem [shape: f32[1,128], index: 2, kind: input, shape index: {}]
  %s3 = inlined_call_operand.vmem [shape: f32[128,128], index: 3, kind: input, shape index: {}]
  %s4 = inlined_call_operand.vmem [shape: f32[1,128], index: 4, kind: input, shape index: {}]
  %s5 = inlined_call_operand.vmem [shape: f32[128,16], index: 5, kind: input, shape index: {}]
  %s6 = inlined_call_operand.vmem [shape: f32[1,16], index: 6, kind: input, shape index: {}]
  %s7 = inlined_call_operand.hbm [shape: f32[8,16], index: 7, kind: output, shape index: {}]
  %s8 = sld [smem:[#allocation0]]
  $region42: #{tpu_custom_call.1} parent=0
    _
  %s10 = ssub.s32 1, %s8
  %s11 = scalar_select 0, %s10, %s8
  $region1: #{tpu_custom_call.1} parent=0
    #allocation2 [shape = 'u8[4096]{0}', space=vmem, size = 0x1000, scoped, tag = 'input window, operand 0, single buffered']
    #allocation3 [shape = 's32[1]{0}', space=sflag, size = 0x4, scoped, tag = 'scoped memory for tpu_custom_call.1']
    #allocation4 [shape = 's32[1]{0}', space=sflag, size = 0x4, scoped, tag = 'scoped memory for tpu_custom_call.1']
    #allocation5 [shape = 'u8[4096]{0}', space=vmem, size = 0x1000, scoped, tag = 'output window, operand 0, single buffered']
    %12 = vsyncpa [#allocation3], 0
    %13 = vsyncpa [#allocation4], 0
    // Predicated region
    $region2: #{tpu_custom_call.1} parent=1 // pred_check
      _
    $region3: #{tpu_custom_call.1} parent=1 // pred_check_branch
      %15 = sbr.rel (0) target = $region5
    $region4: #{tpu_custom_call.1} parent=1 // pred_region
      %s17 = ssub.s32 128, 128
      %18 = vsyncadd [#allocation3], %s17
      %s20 = sshll.u32 [#allocation2], 4
      %s21 = int_to_ptr.vmem [resolvable:$true] %s20
      %23 = dma.hbm_to_vmem [thread:$0]  %s0, 128, %s21, [#allocation3]
    $region5: #{tpu_custom_call.1} parent=1 // pred_fallthru
      _
    // Predicated region
    $region6: #{tpu_custom_call.1} parent=1 // pred_check
      _
    $region7: #{tpu_custom_call.1} parent=1 // pred_check_branch
      %25 = sbr.rel (0) target = $region9
    $region8: #{tpu_custom_call.1} parent=1 // pred_region
      _
    $region9: #{tpu_custom_call.1} parent=1 // pred_fallthru
      _
    // Predicated region
    $region10: #{tpu_custom_call.1} parent=1 // pred_check
      _
    $region11: #{tpu_custom_call.1} parent=1 // pred_check_branch
      %27 = sbr.rel (0) target = $region13
    $region12: #{tpu_custom_call.1} parent=1 // pred_region
      _
    $region13: #{tpu_custom_call.1} parent=1 // pred_fallthru
      _
    // Predicated region
    $region14: #{tpu_custom_call.1} parent=1 // pred_check
      _
    $region15: #{tpu_custom_call.1} parent=1 // pred_check_branch
      %29 = sbr.rel (0) target = $region17
    $region16: #{tpu_custom_call.1} parent=1 // pred_region
      _
    $region17: #{tpu_custom_call.1} parent=1 // pred_fallthru
      _
    // Predicated region
    $region18: #{tpu_custom_call.1} parent=1 // pred_check
      _
    $region19: #{tpu_custom_call.1} parent=1 // pred_check_branch
      %31 = sbr.rel (0) target = $region21
    $region20: #{tpu_custom_call.1} parent=1 // pred_region
      _
    $region21: #{tpu_custom_call.1} parent=1 // pred_fallthru
      _
    // Predicated region
    $region22: #{tpu_custom_call.1} parent=1 // pred_check
      _
    $region23: #{tpu_custom_call.1} parent=1 // pred_check_branch
      %33 = sbr.rel (0) target = $region25
    $region24: #{tpu_custom_call.1} parent=1 // pred_region
      _
    $region25: #{tpu_custom_call.1} parent=1 // pred_fallthru
      _
    // Predicated region
    $region26: #{tpu_custom_call.1} parent=1 // pred_check
      _
    $region27: #{tpu_custom_call.1} parent=1 // pred_check_branch
      %35 = sbr.rel (0) target = $region29
    $region28: #{tpu_custom_call.1} parent=1 // pred_region
      _
    $region29: #{tpu_custom_call.1} parent=1 // pred_fallthru
      _
    // Predicated region
    $region30: #{tpu_custom_call.1} parent=1 // pred_check
      _
    $region31: #{tpu_custom_call.1} parent=1 // pred_check_branch
      %37 = sbr.rel (0) target = $region33
    $region32: #{tpu_custom_call.1} parent=1 // pred_region
      %38 = dma.done [#allocation3], 128
    $region33: #{tpu_custom_call.1} parent=1 // pred_fallthru
      _
    %v39 = vld [vmem:[#allocation2] sm:$0xff]
    %v40 = vld [vmem:[%s1] sm:$0xff]
    %v41 = vld [vmem:[%s1 + $0x8] sm:$0xff]
    %v42 = vld [vmem:[%s2] sm:$0x1]
    %v44 = vlaneseq
    %v45 = vshrl.u32 %v44, 7
    %v46 = vsub.s32 0, %v45
    %v47 = vrot.slane %v42, %v46
    %vm49 = vcmask 130048
    %v51 = vsel %vm49, %v39, 0
    %53 = vmatprep.subr.mxu0 0.0
    %54 = vmatpush1.msra.mxu0 %v40
    %55 = vmatprep.subr.mxu0 0.0
    %56 = vmatpush1.msra.mxu0 %v41
    %57 = vmatprep.subr.mxu0 0.0
    %58 = vmatpush1.msra.mxu0 0.0
    %59 = vmatprep.subr.mxu0 0.0
    %60 = vmatpush1.msra.mxu0 0.0
    %61 = vmatprep.subr.mxu0 0.0
    %62 = vmatpush1.msra.mxu0 0.0
    %63 = vmatprep.subr.mxu0 0.0
    %64 = vmatpush1.msra.mxu0 0.0
    %65 = vmatprep.subr.mxu0 0.0
    %66 = vmatpush1.msra.mxu0 0.0
    %67 = vmatprep.subr.mxu0 0.0
    %68 = vmatpush1.msra.mxu0 0.0
    %69 = vmatprep.subr.mxu0 0.0
    %70 = vmatpush1.msra.mxu0 0.0
    %71 = vmatprep.subr.mxu0 0.0
    %72 = vmatpush1.msra.mxu0 0.0
    %73 = vmatprep.subr.mxu0 0.0
    %74 = vmatpush1.msra.mxu0 0.0
    %75 = vmatprep.subr.mxu0 0.0
    %76 = vmatpush1.msra.mxu0 0.0
    %77 = vmatprep.subr.mxu0 0.0
    %78 = vmatpush1.msra.mxu0 0.0
    %79 = vmatprep.subr.mxu0 0.0
    %80 = vmatpush1.msra.mxu0 0.0
    %81 = vmatprep.subr.mxu0 0.0
    %82 = vmatpush1.msra.mxu0 0.0
    %83 = vmatprep.subr.mxu0 0.0
    %84 = vmatpush1.msra.mxu0 0.0
    %85 = vmatprep.subr.mxu0 0.0
    %86 = vmatpush1.msra.mxu0 0.0
    %87 = vmatprep.subr.mxu0 0.0
    %88 = vmatpush1.msra.mxu0 0.0
    %89 = vmatprep.subr.mxu0 0.0
    %90 = vmatpush1.msra.mxu0 0.0
    %91 = vmatprep.subr.mxu0 0.0
    %92 = vmatpush1.msra.mxu0 0.0
    %93 = vmatprep.subr.mxu0 0.0
    %94 = vmatpush1.msra.mxu0 0.0
    %95 = vmatprep.subr.mxu0 0.0
    %96 = vmatpush1.msra.mxu0 0.0
    %97 = vmatprep.subr.mxu0 0.0
    %98 = vmatpush1.msra.mxu0 0.0
    %99 = vmatprep.subr.mxu0 0.0
    %100 = vmatpush1.msra.mxu0 0.0
    %101 = vmatprep.subr.mxu0 0.0
    %102 = vmatpush1.msra.mxu0 0.0
    %103 = vmatprep.subr.mxu0 0.0
    %104 = vmatpush1.msra.mxu0 0.0
    %105 = vmatprep.subr.mxu0 0.0
    %106 = vmatpush1.msra.mxu0 0.0
    %107 = vmatprep.subr.mxu0 0.0
    %108 = vmatpush1.msra.mxu0 0.0
    %109 = vmatprep.subr.mxu0 0.0
    %110 = vmatpush1.msra.mxu0 0.0
    %111 = vmatprep.subr.mxu0 0.0
    %112 = vmatpush1.msra.mxu0 0.0
    %113 = vmatprep.subr.mxu0 0.0
    %114 = vmatpush1.msra.mxu0 0.0
    %115 = vmatprep.subr.mxu0 0.0
    %116 = vmatpush1.msra.mxu0 0.0
    %117 = vmatprep.mubr.f32.mxu0 0.0
    %118 = vmatmul.mubr.f32.gmra.mrb[0].mxu0 %v51
    %v119 = vpop.f32.mrb[0].mxu0
    %v120 = vadd.f32 %v47, %v119
    %v121 = vpop.f32.mrb[0].mxu0
    %122 = vdwg.mxu0
    %vm123 = vcmp.gt.f32.partialorder %v120, 0.0
    %v124 = vmul.f32 %v120, 0.01
    %v125 = vsel %vm123, %v120, %v124
    %v126 = vld [vmem:[%s3] sm:$0xff]
    %v127 = vld [vmem:[%s3 + $0x8] sm:$0xff]
    %v128 = vld [vmem:[%s3 + $0x10] sm:$0xff]
    %v129 = vld [vmem:[%s3 + $0x18] sm:$0xff]
    %v130 = vld [vmem:[%s3 + $0x20] sm:$0xff]
    %v131 = vld [vmem:[%s3 + $0x28] sm:$0xff]
    %v132 = vld [vmem:[%s3 + $0x30] sm:$0xff]
    %v133 = vld [vmem:[%s3 + $0x38] sm:$0xff]
    %v134 = vld [vmem:[%s3 + $0x40] sm:$0xff]
    %v135 = vld [vmem:[%s3 + $0x48] sm:$0xff]
    %v136 = vld [vmem:[%s3 + $0x50] sm:$0xff]
    %v137 = vld [vmem:[%s3 + $0x58] sm:$0xff]
    %v138 = vld [vmem:[%s3 + $0x60] sm:$0xff]
    %v139 = vld [vmem:[%s3 + $0x68] sm:$0xff]
    %v140 = vld [vmem:[%s3 + $0x70] sm:$0xff]
    %v141 = vld [vmem:[%s3 + $0x78] sm:$0xff]
    %v142 = vld [vmem:[%s4] sm:$0x1]
    %v144 = vlaneseq
    %v145 = vshrl.u32 %v144, 7
    %v146 = vsub.s32 0, %v145
    %v147 = vrot.slane %v142, %v146
    %149 = vmatprep.subr.mxu0 0.0
    %150 = vmatpush1.msra.mxu0 %v126
    %151 = vmatprep.subr.mxu0 0.0
    %152 = vmatpush1.msra.mxu0 %v127
    %153 = vmatprep.subr.mxu0 0.0
    %154 = vmatpush1.msra.mxu0 %v128
    %155 = vmatprep.subr.mxu0 0.0
    %156 = vmatpush1.msra.mxu0 %v129
    %157 = vmatprep.subr.mxu0 0.0
    %158 = vmatpush1.msra.mxu0 %v130
    %159 = vmatprep.subr.mxu0 0.0
    %160 = vmatpush1.msra.mxu0 %v131
    %161 = vmatprep.subr.mxu0 0.0
    %162 = vmatpush1.msra.mxu0 %v132
    %163 = vmatprep.subr.mxu0 0.0
    %164 = vmatpush1.msra.mxu0 %v133
    %165 = vmatprep.subr.mxu0 0.0
    %166 = vmatpush1.msra.mxu0 %v134
    %167 = vmatprep.subr.mxu0 0.0
    %168 = vmatpush1.msra.mxu0 %v135
    %169 = vmatprep.subr.mxu0 0.0
    %170 = vmatpush1.msra.mxu0 %v136
    %171 = vmatprep.subr.mxu0 0.0
    %172 = vmatpush1.msra.mxu0 %v137
    %173 = vmatprep.subr.mxu0 0.0
    %174 = vmatpush1.msra.mxu0 %v138
    %175 = vmatprep.subr.mxu0 0.0
    %176 = vmatpush1.msra.mxu0 %v139
    %177 = vmatprep.subr.mxu0 0.0
    %178 = vmatpush1.msra.mxu0 %v140
    %179 = vmatprep.subr.mxu0 0.0
    %180 = vmatpush1.msra.mxu0 %v141
    %181 = vmatprep.subr.mxu0 0.0
    %182 = vmatpush1.msra.mxu0 0.0
    %183 = vmatprep.subr.mxu0 0.0
    %184 = vmatpush1.msra.mxu0 0.0
    %185 = vmatprep.subr.mxu0 0.0
    %186 = vmatpush1.msra.mxu0 0.0
    %187 = vmatprep.subr.mxu0 0.0
    %188 = vmatpush1.msra.mxu0 0.0
    %189 = vmatprep.subr.mxu0 0.0
    %190 = vmatpush1.msra.mxu0 0.0
    %191 = vmatprep.subr.mxu0 0.0
    %192 = vmatpush1.msra.mxu0 0.0
    %193 = vmatprep.subr.mxu0 0.0
    %194 = vmatpush1.msra.mxu0 0.0
    %195 = vmatprep.subr.mxu0 0.0
    %196 = vmatpush1.msra.mxu0 0.0
    %197 = vmatprep.subr.mxu0 0.0
    %198 = vmatpush1.msra.mxu0 0.0
    %199 = vmatprep.subr.mxu0 0.0
    %200 = vmatpush1.msra.mxu0 0.0
    %201 = vmatprep.subr.mxu0 0.0
    %202 = vmatpush1.msra.mxu0 0.0
    %203 = vmatprep.subr.mxu0 0.0
    %204 = vmatpush1.msra.mxu0 0.0
    %205 = vmatprep.subr.mxu0 0.0
    %206 = vmatpush1.msra.mxu0 0.0
    %207 = vmatprep.subr.mxu0 0.0
    %208 = vmatpush1.msra.mxu0 0.0
    %209 = vmatprep.subr.mxu0 0.0
    %210 = vmatpush1.msra.mxu0 0.0
    %211 = vmatprep.subr.mxu0 0.0
    %212 = vmatpush1.msra.mxu0 0.0
    %213 = vmatprep.mubr.f32.mxu0 0.0
    %214 = vmatmul.mubr.f32.gmra.mrb[0].mxu0 %v125
    %v215 = vpop.f32.mrb[0].mxu0
    %v216 = vadd.f32 %v147, %v215
    %v217 = vpop.f32.mrb[0].mxu0
    %218 = vdwg.mxu0
    %vm219 = vcmp.gt.f32.partialorder %v216, 0.0
    %v220 = vmul.f32 %v216, 0.01
    %v221 = vsel %vm219, %v216, %v220
    %v222 = vld [vmem:[%s5] sm:$0xff]
    %v223 = vld [vmem:[%s5 + $0x8] sm:$0xff]
    %v224 = vld [vmem:[%s5 + $0x10] sm:$0xff]
    %v225 = vld [vmem:[%s5 + $0x18] sm:$0xff]
    %v226 = vld [vmem:[%s5 + $0x20] sm:$0xff]
    %v227 = vld [vmem:[%s5 + $0x28] sm:$0xff]
    %v228 = vld [vmem:[%s5 + $0x30] sm:$0xff]
    %v229 = vld [vmem:[%s5 + $0x38] sm:$0xff]
    %v230 = vld [vmem:[%s5 + $0x40] sm:$0xff]
    %v231 = vld [vmem:[%s5 + $0x48] sm:$0xff]
    %v232 = vld [vmem:[%s5 + $0x50] sm:$0xff]
    %v233 = vld [vmem:[%s5 + $0x58] sm:$0xff]
    %v234 = vld [vmem:[%s5 + $0x60] sm:$0xff]
    %v235 = vld [vmem:[%s5 + $0x68] sm:$0xff]
    %v236 = vld [vmem:[%s5 + $0x70] sm:$0xff]
    %v237 = vld [vmem:[%s5 + $0x78] sm:$0xff]
    %v238 = vld [vmem:[%s6] sm:$0x1]
    %v240 = vlaneseq
    %v241 = vshrl.u32 %v240, 7
    %v242 = vsub.s32 0, %v241
    %v243 = vrot.slane %v238, %v242
    %245 = vmatprep.subr.mxu0 0.0
    %246 = vmatpush1.msra.mxu0 %v222
    %247 = vmatprep.subr.mxu0 0.0
    %248 = vmatpush1.msra.mxu0 %v223
    %249 = vmatprep.subr.mxu0 0.0
    %250 = vmatpush1.msra.mxu0 %v224
    %251 = vmatprep.subr.mxu0 0.0
    %252 = vmatpush1.msra.mxu0 %v225
    %253 = vmatprep.subr.mxu0 0.0
    %254 = vmatpush1.msra.mxu0 %v226
    %255 = vmatprep.subr.mxu0 0.0
    %256 = vmatpush1.msra.mxu0 %v227
    %257 = vmatprep.subr.mxu0 0.0
    %258 = vmatpush1.msra.mxu0 %v228
    %259 = vmatprep.subr.mxu0 0.0
    %260 = vmatpush1.msra.mxu0 %v229
    %261 = vmatprep.subr.mxu0 0.0
    %262 = vmatpush1.msra.mxu0 %v230
    %263 = vmatprep.subr.mxu0 0.0
    %264 = vmatpush1.msra.mxu0 %v231
    %265 = vmatprep.subr.mxu0 0.0
    %266 = vmatpush1.msra.mxu0 %v232
    %267 = vmatprep.subr.mxu0 0.0
    %268 = vmatpush1.msra.mxu0 %v233
    %269 = vmatprep.subr.mxu0 0.0
    %270 = vmatpush1.msra.mxu0 %v234
    %271 = vmatprep.subr.mxu0 0.0
    %272 = vmatpush1.msra.mxu0 %v235
    %273 = vmatprep.subr.mxu0 0.0
    %274 = vmatpush1.msra.mxu0 %v236
    %275 = vmatprep.subr.mxu0 0.0
    %276 = vmatpush1.msra.mxu0 %v237
    %277 = vmatprep.subr.mxu0 0.0
    %278 = vmatpush1.msra.mxu0 0.0
    %279 = vmatprep.subr.mxu0 0.0
    %280 = vmatpush1.msra.mxu0 0.0
    %281 = vmatprep.subr.mxu0 0.0
    %282 = vmatpush1.msra.mxu0 0.0
    %283 = vmatprep.subr.mxu0 0.0
    %284 = vmatpush1.msra.mxu0 0.0
    %285 = vmatprep.subr.mxu0 0.0
    %286 = vmatpush1.msra.mxu0 0.0
    %287 = vmatprep.subr.mxu0 0.0
    %288 = vmatpush1.msra.mxu0 0.0
    %289 = vmatprep.subr.mxu0 0.0
    %290 = vmatpush1.msra.mxu0 0.0
    %291 = vmatprep.subr.mxu0 0.0
    %292 = vmatpush1.msra.mxu0 0.0
    %293 = vmatprep.subr.mxu0 0.0
    %294 = vmatpush1.msra.mxu0 0.0
    %295 = vmatprep.subr.mxu0 0.0
    %296 = vmatpush1.msra.mxu0 0.0
    %297 = vmatprep.subr.mxu0 0.0
    %298 = vmatpush1.msra.mxu0 0.0
    %299 = vmatprep.subr.mxu0 0.0
    %300 = vmatpush1.msra.mxu0 0.0
    %301 = vmatprep.subr.mxu0 0.0
    %302 = vmatpush1.msra.mxu0 0.0
    %303 = vmatprep.subr.mxu0 0.0
    %304 = vmatpush1.msra.mxu0 0.0
    %305 = vmatprep.subr.mxu0 0.0
    %306 = vmatpush1.msra.mxu0 0.0
    %307 = vmatprep.subr.mxu0 0.0
    %308 = vmatpush1.msra.mxu0 0.0
    %309 = vmatprep.mubr.f32.mxu0 0.0
    %310 = vmatmul.mubr.f32.gmra.mrb[0].mxu0 %v221
    %v311 = vpop.f32.mrb[0].mxu0
    %v312 = vadd.f32 %v243, %v311
    %v313 = vpop.f32.mrb[0].mxu0
    %314 = vdwg.mxu0
    %315 = vst.msk [vmem:[#allocation5] sm:$0xff] %vm49, %v312
    // Predicated region
    $region34: #{tpu_custom_call.1} parent=1 // pred_check
      _
    $region35: #{tpu_custom_call.1} parent=1 // pred_check_branch
      %317 = sbr.rel (0) target = $region37
    $region36: #{tpu_custom_call.1} parent=1 // pred_region
      %s319 = ssub.s32 128, 128
      %320 = vsyncadd [#allocation4], %s319
      %s322 = sshll.u32 [#allocation5], 4
      %s323 = int_to_ptr.vmem [resolvable:$true] %s322
      %325 = dma.vmem_to_hbm [thread:$0]  %s323, 128, %s7, [#allocation4]
    $region37: #{tpu_custom_call.1} parent=1 // pred_fallthru
      _
    // Predicated region
    $region38: #{tpu_custom_call.1} parent=1 // pred_check
      _
    $region39: #{tpu_custom_call.1} parent=1 // pred_check_branch
      %327 = sbr.rel (0) target = $region41
    $region40: #{tpu_custom_call.1} parent=1 // pred_region
      %328 = dma.done [#allocation4], 128
    $region41: #{tpu_custom_call.1} parent=1 // pred_fallthru
      _
    %329 = vsyncpa [#allocation3], 1
    %330 = vsyncpa [#allocation4], 1

</llo_original>
